<compile_context>
chip_gen: v7x
topology: tpu7x:2x2x1
jax: 0.10.0
libtpu: 0.0.40
codegen_flags: <defaults>
</compile_context>

<pallas_src>
import jax
import jax.numpy as jnp
from jax.experimental import pallas as pl
from jax.experimental.pallas import tpu as pltpu

_LANE = 128      # lane granularity: batch tiles must be a multiple of this
_MAX_TB = 2048   # batch-tile cap (keeps 2x-buffered VMEM use well under limits)


def fm_kernel(bias_ref, ue_ref, me_ref, gen_ref, gw_ref, out_ref):
    # bias_ref: (1, TB)  folded global + user + movie bias
    # ue_ref:   (D, TB)  gathered user embeddings, transposed (batch on lanes)
    # me_ref:   (D, TB)  gathered movie embeddings, transposed
    # gen_ref:  (G, TB)  genre multi-hot, transposed
    # gw_ref:   (D, G)   genre embedding table, transposed (grid-resident)
    ue = ue_ref[...]
    me = me_ref[...]

    # genre_emb^T = genre_weight^T @ genres^T  -> (D, TB); MXU with N = TB lanes.
    ge = jnp.dot(gw_ref[...], gen_ref[...], preferred_element_type=jnp.float32)

    # FM second-order interaction, pairwise form for the 3 feature vectors:
    #   0.5*((u+m+g)^2 - (u^2+m^2+g^2)) == u*m + u*g + m*g  (per dim, summed over D)
    inter = jnp.sum(ue * me + (ue + me) * ge, axis=0, keepdims=True)   # (1, TB)

    out_ref[...] = bias_ref[...] + inter                               # lane-dense store


def fm_forward(params, user_ids, movie_ids, movie_genres):
    """JAX wrapper reproducing FactorizationMachine.forward."""
    D = params["user_embedding"].shape[1]
    G = params["genre_embedding"].shape[0]
    B = user_ids.shape[0]

    # Glue: data-dependent row gathers + bias folding (fused by XLA). The
    # kernel receives transposed, lane-dense [feature, batch] slabs.
    ue_t = jnp.take(params["user_embedding"], user_ids, axis=0).T        # [D, B]
    me_t = jnp.take(params["movie_embedding"], movie_ids, axis=0).T      # [D, B]
    gen_t = movie_genres.astype(jnp.float32).T                           # [G, B]
    gw_t = params["genre_embedding"].T                                   # [D, G]
    bias = (params["global_bias"][0]
            + jnp.take(params["user_bias"], user_ids, axis=0)[:, 0]
            + jnp.take(params["movie_bias"], movie_ids, axis=0)[:, 0])   # [B]

    # Pad batch to a multiple of the tile size (128-lane granularity); padded
    # columns are zero and are sliced off after the kernel.
    TB = min(_MAX_TB, pl.cdiv(B, _LANE) * _LANE)
    B_pad = pl.cdiv(B, TB) * TB
    pad = B_pad - B
    ue_t = jnp.pad(ue_t, ((0, 0), (0, pad)))
    me_t = jnp.pad(me_t, ((0, 0), (0, pad)))
    gen_t = jnp.pad(gen_t, ((0, 0), (0, pad)))
    bias_t = jnp.pad(bias, (0, pad)).reshape(1, B_pad)

    out = pl.pallas_call(
        fm_kernel,
        out_shape=jax.ShapeDtypeStruct((1, B_pad), jnp.float32),
        grid=(B_pad // TB,),
        in_specs=[
            pl.BlockSpec((1, TB), lambda i: (0, i)),    # folded bias
            pl.BlockSpec((D, TB), lambda i: (0, i)),    # user emb^T
            pl.BlockSpec((D, TB), lambda i: (0, i)),    # movie emb^T
            pl.BlockSpec((G, TB), lambda i: (0, i)),    # genres^T
            pl.BlockSpec((D, G), lambda i: (0, 0)),     # genre weight^T (resident)
        ],
        out_specs=pl.BlockSpec((1, TB), lambda i: (0, i)),
        compiler_params=pltpu.CompilerParams(
            dimension_semantics=("parallel",)),
    )(bias_t, ue_t, me_t, gen_t, gw_t)

    # [B]; matches the PyTorch .squeeze() output for batch > 1.
    # TODO(synk): for B == 1 torch .squeeze() returns a 0-d scalar; we keep [B].
    return out[0, :B]


def fm_reference(params, user_ids, movie_ids, movie_genres):
    """Pure-JAX reference mirroring the PyTorch forward."""
    user_emb = params["user_embedding"][user_ids]
    movie_emb = params["movie_embedding"][movie_ids]
    genre_emb = movie_genres.astype(jnp.float32) @ params["genre_embedding"]
    bias = (params["global_bias"][0]
            + params["user_bias"][user_ids][:, 0]
            + params["movie_bias"][movie_ids][:, 0])
    all_emb = jnp.stack([user_emb, movie_emb, genre_emb], axis=1)        # [B, 3, D]
    summed = jnp.sum(all_emb, axis=1)
    summed_squares = jnp.sum(summed ** 2, axis=1)
    squared_sum = jnp.sum(all_emb ** 2, axis=(1, 2))
    return bias + 0.5 * (summed_squares - squared_sum)


def init_params(key, num_users, num_movies, num_genres, embedding_dim):
    k1, k2, k3 = jax.random.split(key, 3)
    return {
        "user_embedding": 0.01 * jax.random.normal(k1, (num_users, embedding_dim), jnp.float32),
        "movie_embedding": 0.01 * jax.random.normal(k2, (num_movies, embedding_dim), jnp.float32),
        "genre_embedding": 0.01 * jax.random.normal(k3, (num_genres, embedding_dim), jnp.float32),
        "global_bias": jnp.zeros((1,), jnp.float32),
        "user_bias": jnp.zeros((num_users, 1), jnp.float32),
        "movie_bias": jnp.zeros((num_movies, 1), jnp.float32),
    }


if __name__ == "__main__":
    num_users, num_movies, num_genres, embedding_dim = 32, 64, 8, 16
    batch = 8

    key = jax.random.PRNGKey(0)
    kp, ku, km, kg = jax.random.split(key, 4)
    params = init_params(kp, num_users, num_movies, num_genres, embedding_dim)

    user_ids = jax.random.randint(ku, (batch,), 0, num_users, dtype=jnp.int32)
    movie_ids = jax.random.randint(km, (batch,), 0, num_movies, dtype=jnp.int32)
    movie_genres = (jax.random.uniform(kg, (batch, num_genres)) < 0.3).astype(jnp.float32)

    pred = jax.block_until_ready(fm_forward(params, user_ids, movie_ids, movie_genres))
    ref = jax.block_until_ready(fm_reference(params, user_ids, movie_ids, movie_genres))

    assert pred.shape == (batch,), pred.shape
    assert jnp.allclose(pred, ref, atol=1e-6, rtol=1e-5), (pred, ref)
    print("KERNEL_OK")
</pallas_src>

<mosaic_0001>
module attributes {stable_mosaic.version = 11 : i64} {
  func.func @fm_kernel(%arg0: i32, %arg1: memref<1x128xf32, #tpu.memory_space<vmem>>, %arg2: memref<16x128xf32, #tpu.memory_space<vmem>>, %arg3: memref<16x128xf32, #tpu.memory_space<vmem>>, %arg4: memref<8x128xf32, #tpu.memory_space<vmem>>, %arg5: memref<16x8xf32, #tpu.memory_space<vmem>>, %arg6: memref<1x128xf32, #tpu.memory_space<vmem>>) attributes {dimension_semantics = [#tpu.dimension_semantics<parallel>], iteration_bounds = array<i64: 1>, scalar_prefetch = 0 : i64, scratch_operands = 0 : i64, tpu.core_type = #tpu.core_type<tc>, window_params = [{transform_indices = @transform_0, window_bounds = array<i64: 1, 128>}, {transform_indices = @transform_1, window_bounds = array<i64: 16, 128>}, {transform_indices = @transform_2, window_bounds = array<i64: 16, 128>}, {transform_indices = @transform_3, window_bounds = array<i64: 8, 128>}, {pipeline_mode = #tpu.pipeline_mode<synchronous>, transform_indices = @transform_4, window_bounds = array<i64: 16, 8>}, {transform_indices = @transform_5, window_bounds = array<i64: 1, 128>}]} {
    %c0 = arith.constant 0 : index
    %c0_0 = arith.constant 0 : index
    %0 = vector.load %arg2[%c0, %c0_0] : memref<16x128xf32, #tpu.memory_space<vmem>>, vector<16x128xf32>
    %c0_1 = arith.constant 0 : index
    %c0_2 = arith.constant 0 : index
    %1 = vector.load %arg3[%c0_1, %c0_2] : memref<16x128xf32, #tpu.memory_space<vmem>>, vector<16x128xf32>
    %c0_3 = arith.constant 0 : index
    %c0_4 = arith.constant 0 : index
    %2 = vector.load %arg5[%c0_3, %c0_4] : memref<16x8xf32, #tpu.memory_space<vmem>>, vector<16x8xf32>
    %c0_5 = arith.constant 0 : index
    %c0_6 = arith.constant 0 : index
    %3 = vector.load %arg4[%c0_5, %c0_6] : memref<8x128xf32, #tpu.memory_space<vmem>>, vector<8x128xf32>
    %cst = arith.constant dense<0.000000e+00> : vector<16x128xf32>
    %4 = tpu.matmul %2, %3, %cst {dimension_numbers = #tpu.dot_dimension_numbers<[1], [0], [0], [1], [0, 0, 1, 1], [], []>} : vector<16x8xf32>, vector<8x128xf32>, vector<16x128xf32> -> vector<16x128xf32>
    %5 = arith.mulf %0, %1 : vector<16x128xf32>
    %6 = arith.addf %0, %1 : vector<16x128xf32>
    %7 = arith.mulf %6, %4 : vector<16x128xf32>
    %8 = arith.addf %5, %7 : vector<16x128xf32>
    %cst_7 = arith.constant dense<0.000000e+00> : vector<128xf32>
    %9 = vector.multi_reduction <add>, %8, %cst_7 [0] : vector<16x128xf32> to vector<128xf32>
    %10 = vector.shape_cast %9 : vector<128xf32> to vector<1x128xf32>
    %c0_8 = arith.constant 0 : index
    %c0_9 = arith.constant 0 : index
    %11 = vector.load %arg1[%c0_8, %c0_9] : memref<1x128xf32, #tpu.memory_space<vmem>>, vector<1x128xf32>
    %12 = arith.addf %11, %10 : vector<1x128xf32>
    %c0_10 = arith.constant 0 : index
    %c0_11 = arith.constant 0 : index
    %13 = vector.load %arg6[%c0_10, %c0_11] : memref<1x128xf32, #tpu.memory_space<vmem>>, vector<1x128xf32>
    tpu.vector_store %arg6[%c0_10, %c0_11], %12 {strides = array<i32>} : memref<1x128xf32, #tpu.memory_space<vmem>>, vector<1x128xf32>,
    return
  }
  func.func @transform_0(%arg0: i32) -> (i32, i32) {
    %c0_i32 = arith.constant 0 : i32
    %c0_i32_0 = arith.constant 0 : i32
    return %c0_i32, %arg0 : i32, i32
  }
  func.func @transform_1(%arg0: i32) -> (i32, i32) {
    %c0_i32 = arith.constant 0 : i32
    %c0_i32_0 = arith.constant 0 : i32
    return %c0_i32, %arg0 : i32, i32
  }
  func.func @transform_2(%arg0: i32) -> (i32, i32) {
    %c0_i32 = arith.constant 0 : i32
    %c0_i32_0 = arith.constant 0 : i32
    return %c0_i32, %arg0 : i32, i32
  }
  func.func @transform_3(%arg0: i32) -> (i32, i32) {
    %c0_i32 = arith.constant 0 : i32
    %c0_i32_0 = arith.constant 0 : i32
    return %c0_i32, %arg0 : i32, i32
  }
  func.func @transform_4(%arg0: i32) -> (i32, i32) {
    %c0_i32 = arith.constant 0 : i32
    %c0_i32_0 = arith.constant 0 : i32
    %c0_i32_1 = arith.constant 0 : i32
    return %c0_i32, %c0_i32_0 : i32, i32
  }
  func.func @transform_5(%arg0: i32) -> (i32, i32) {
    %c0_i32 = arith.constant 0 : i32
    %c0_i32_0 = arith.constant 0 : i32
    return %c0_i32, %arg0 : i32, i32
  }
}

</mosaic_0001>

<llo_original>
// kernel: tpu_custom_call.1
$region0: #{tpu_custom_call.1}
  #allocation0 [shape = 'u32[]', space=smem, size = 0x4, offset = 0x4, fixed_abs, tag = 'smem constant byte address 0x4 - core index']
  #allocation1 [shape = 'u32[144,128]{1,0:T(1,128)}', space=vmem, size = 0x12000, scoped, tag = 'internal scratch']
  %s0 = inlined_call_operand.vmem [shape: f32[1,128], index: 0, kind: input, shape index: {}]
  %s1 = inlined_call_operand.vmem [shape: f32[16,128], index: 1, kind: input, shape index: {}]
  %s2 = inlined_call_operand.hbm [shape: f32[16,128], index: 2, kind: input, shape index: {}]
  %s3 = inlined_call_operand.vmem [shape: f32[8,128], index: 3, kind: input, shape index: {}]
  %s4 = inlined_call_operand.vmem [shape: f32[16,8], index: 4, kind: input, shape index: {}]
  %s5 = inlined_call_operand.hbm [shape: f32[1,128], index: 5, kind: output, shape index: {}]
  %s6 = sld [smem:[#allocation0]]
  $region34: #{tpu_custom_call.1} parent=0
    _
  %s8 = ssub.s32 1, %s6
  %s9 = scalar_select 0, %s8, %s6
  $region1: #{tpu_custom_call.1} parent=0
    #allocation2 [shape = 'u8[8192]{0}', space=vmem, size = 0x2000, scoped, tag = 'input window, operand 2, single buffered']
    #allocation3 [shape = 's32[1]{0}', space=sflag, size = 0x4, scoped, tag = 'scoped memory for tpu_custom_call.1']
    #allocation4 [shape = 's32[1]{0}', space=sflag, size = 0x4, scoped, tag = 'scoped memory for tpu_custom_call.1']
    #allocation5 [shape = 'u8[512]{0}', space=vmem, size = 0x400, scoped, tag = 'output window, operand 0, single buffered']
    %10 = vsyncpa [#allocation3], 0
    %11 = vsyncpa [#allocation4], 0
    // Predicated region
    $region2: #{tpu_custom_call.1} parent=1 // pred_check
      _
    $region3: #{tpu_custom_call.1} parent=1 // pred_check_branch
      %13 = sbr.rel (0) target = $region5
    $region4: #{tpu_custom_call.1} parent=1 // pred_region
      _
    $region5: #{tpu_custom_call.1} parent=1 // pred_fallthru
      _
    // Predicated region
    $region6: #{tpu_custom_call.1} parent=1 // pred_check
      _
    $region7: #{tpu_custom_call.1} parent=1 // pred_check_branch
      %15 = sbr.rel (0) target = $region9
    $region8: #{tpu_custom_call.1} parent=1 // pred_region
      _
    $region9: #{tpu_custom_call.1} parent=1 // pred_fallthru
      _
    // Predicated region
    $region10: #{tpu_custom_call.1} parent=1 // pred_check
      _
    $region11: #{tpu_custom_call.1} parent=1 // pred_check_branch
      %17 = sbr.rel (0) target = $region13
    $region12: #{tpu_custom_call.1} parent=1 // pred_region
      %s19 = ssub.s32 256, 256
      %20 = vsyncadd [#allocation3], %s19
      %s21 = sshll.u32 [#allocation2], 4
      %s22 = int_to_ptr.vmem [resolvable:$true] %s21
      %27 = dma.hbm_to_vmem [thread:$0]  %s2, 256, %s22, [#allocation3], 128, 128, 8
    $region13: #{tpu_custom_call.1} parent=1 // pred_fallthru
      _
    // Predicated region
    $region14: #{tpu_custom_call.1} parent=1 // pred_check
      _
    $region15: #{tpu_custom_call.1} parent=1 // pred_check_branch
      %29 = sbr.rel (0) target = $region17
    $region16: #{tpu_custom_call.1} parent=1 // pred_region
      _
    $region17: #{tpu_custom_call.1} parent=1 // pred_fallthru
      _
    // Predicated region
    $region18: #{tpu_custom_call.1} parent=1 // pred_check
      _
    $region19: #{tpu_custom_call.1} parent=1 // pred_check_branch
      %31 = sbr.rel (0) target = $region21
    $region20: #{tpu_custom_call.1} parent=1 // pred_region
      _
    $region21: #{tpu_custom_call.1} parent=1 // pred_fallthru
      _
    // Predicated region
    $region22: #{tpu_custom_call.1} parent=1 // pred_check
      _
    $region23: #{tpu_custom_call.1} parent=1 // pred_check_branch
      %33 = sbr.rel (0) target = $region25
    $region24: #{tpu_custom_call.1} parent=1 // pred_region
      %34 = dma.done [#allocation3], 256
    $region25: #{tpu_custom_call.1} parent=1 // pred_fallthru
      _
    %v35 = vld [vmem:[%s1] sm:$0xff]
    %v36 = vld [vmem:[%s1 + $0x8] sm:$0xff]
    %v37 = vld [vmem:[#allocation2] sm:$0xff]
    %v38 = vld [vmem:[#allocation2 + $0x8] sm:$0xff]
    %v39 = vld [vmem:[%s4] sm:$0xff]
    %v40 = vld [vmem:[%s4 + $0x8] sm:$0xff]
    %v41 = vld [vmem:[%s3] sm:$0xff]
    %vm42 = vcmask 64512
    %v44 = vsel %vm42, %v39, 0
    %v47 = vsel %vm42, %v40, 0
    %49 = vmatprep.subr.mxu0 0.0
    %50 = vmatpush1.msra.mxu0 %v41
    %51 = vmatprep.subr.mxu0 0.0
    %52 = vmatpush1.msra.mxu0 0.0
    %53 = vmatprep.subr.mxu0 0.0
    %54 = vmatpush1.msra.mxu0 0.0
    %55 = vmatprep.subr.mxu0 0.0
    %56 = vmatpush1.msra.mxu0 0.0
    %57 = vmatprep.subr.mxu0 0.0
    %58 = vmatpush1.msra.mxu0 0.0
    %59 = vmatprep.subr.mxu0 0.0
    %60 = vmatpush1.msra.mxu0 0.0
    %61 = vmatprep.subr.mxu0 0.0
    %62 = vmatpush1.msra.mxu0 0.0
    %63 = vmatprep.subr.mxu0 0.0
    %64 = vmatpush1.msra.mxu0 0.0
    %65 = vmatprep.subr.mxu0 0.0
    %66 = vmatpush1.msra.mxu0 0.0
    %67 = vmatprep.subr.mxu0 0.0
    %68 = vmatpush1.msra.mxu0 0.0
    %69 = vmatprep.subr.mxu0 0.0
    %70 = vmatpush1.msra.mxu0 0.0
    %71 = vmatprep.subr.mxu0 0.0
    %72 = vmatpush1.msra.mxu0 0.0
    %73 = vmatprep.subr.mxu0 0.0
    %74 = vmatpush1.msra.mxu0 0.0
    %75 = vmatprep.subr.mxu0 0.0
    %76 = vmatpush1.msra.mxu0 0.0
    %77 = vmatprep.subr.mxu0 0.0
    %78 = vmatpush1.msra.mxu0 0.0
    %79 = vmatprep.subr.mxu0 0.0
    %80 = vmatpush1.msra.mxu0 0.0
    %81 = vmatprep.subr.mxu0 0.0
    %82 = vmatpush1.msra.mxu0 0.0
    %83 = vmatprep.subr.mxu0 0.0
    %84 = vmatpush1.msra.mxu0 0.0
    %85 = vmatprep.subr.mxu0 0.0
    %86 = vmatpush1.msra.mxu0 0.0
    %87 = vmatprep.subr.mxu0 0.0
    %88 = vmatpush1.msra.mxu0 0.0
    %89 = vmatprep.subr.mxu0 0.0
    %90 = vmatpush1.msra.mxu0 0.0
    %91 = vmatprep.subr.mxu0 0.0
    %92 = vmatpush1.msra.mxu0 0.0
    %93 = vmatprep.subr.mxu0 0.0
    %94 = vmatpush1.msra.mxu0 0.0
    %95 = vmatprep.subr.mxu0 0.0
    %96 = vmatpush1.msra.mxu0 0.0
    %97 = vmatprep.subr.mxu0 0.0
    %98 = vmatpush1.msra.mxu0 0.0
    %99 = vmatprep.subr.mxu0 0.0
    %100 = vmatpush1.msra.mxu0 0.0
    %101 = vmatprep.subr.mxu0 0.0
    %102 = vmatpush1.msra.mxu0 0.0
    %103 = vmatprep.subr.mxu0 0.0
    %104 = vmatpush1.msra.mxu0 0.0
    %105 = vmatprep.subr.mxu0 0.0
    %106 = vmatpush1.msra.mxu0 0.0
    %107 = vmatprep.subr.mxu0 0.0
    %108 = vmatpush1.msra.mxu0 0.0
    %109 = vmatprep.subr.mxu0 0.0
    %110 = vmatpush1.msra.mxu0 0.0
    %111 = vmatprep.subr.mxu0 0.0
    %112 = vmatpush1.msra.mxu0 0.0
    %113 = vmatprep.mubr.f32.mxu0 0.0
    %114 = vmatmul.mubr.f32.gmra.mrb[0].mxu0 %v44
    %v115 = vpop.f32.mrb[0].mxu0
    %v116 = vadd.f32 0.0, %v115
    %v117 = vpop.f32.mrb[0].mxu0
    %118 = vmatprep.mubr.f32.mxu0 0.0
    %119 = vmatmul.mubr.f32.gmra.mrb[0].mxu0 %v47
    %v120 = vpop.f32.mrb[0].mxu0
    %v121 = vadd.f32 0.0, %v120
    %v122 = vpop.f32.mrb[0].mxu0
    %123 = vdwg.mxu0
    %v124 = vmul.f32 %v35, %v37
    %v125 = vmul.f32 %v36, %v38
    %v126 = vadd.f32 %v35, %v37
    %v127 = vadd.f32 %v36, %v38
    %v128 = vmul.f32 %v126, %v116
    %v129 = vmul.f32 %v127, %v121
    %v130 = vadd.f32 %v124, %v128
    %v131 = vadd.f32 %v125, %v129
    %v132 = vadd.f32 %v130, %v131
    %v133 = vrot.slane %v132, 4
    %v134 = vadd.f32 %v132, %v133
    %v135 = vrot.slane %v134, 2
    %v136 = vadd.f32 %v134, %v135
    %v137 = vrot.slane %v136, 1
    %v138 = vadd.f32 %v136, %v137
    %v139 = vld [vmem:[%s0] sm:$0x1]
    %v140 = vadd.f32 %v139, %v138
    %141 = vst [vmem:[#allocation5] sm:$0x1] %v140
    // Predicated region
    $region26: #{tpu_custom_call.1} parent=1 // pred_check
      _
    $region27: #{tpu_custom_call.1} parent=1 // pred_check_branch
      %143 = sbr.rel (0) target = $region29
    $region28: #{tpu_custom_call.1} parent=1 // pred_region
      %s145 = ssub.s32 16, 16
      %146 = vsyncadd [#allocation4], %s145
      %s148 = sshll.u32 [#allocation5], 4
      %s149 = int_to_ptr.vmem [resolvable:$true] %s148
      %151 = dma.vmem_to_hbm [thread:$0]  %s149, 16, %s5, [#allocation4]
    $region29: #{tpu_custom_call.1} parent=1 // pred_fallthru
      _
    // Predicated region
    $region30: #{tpu_custom_call.1} parent=1 // pred_check
      _
    $region31: #{tpu_custom_call.1} parent=1 // pred_check_branch
      %153 = sbr.rel (0) target = $region33
    $region32: #{tpu_custom_call.1} parent=1 // pred_region
      %154 = dma.done [#allocation4], 16
    $region33: #{tpu_custom_call.1} parent=1 // pred_fallthru
      _
    %155 = vsyncpa [#allocation3], 1
    %156 = vsyncpa [#allocation4], 1

</llo_original>
